<compile_context>
chip_gen: v7x
topology: tpu7x:2x2x1
jax: 0.10.0
libtpu: 0.0.40
codegen_flags: <defaults>
</compile_context>

<pallas_src>
import jax
import jax.numpy as jnp
from jax.experimental import pallas as pl
from jax.experimental.pallas import tpu as pltpu


def _linear_sigmoid_kernel(params_ref, x_ref, o_ref):
    # params_ref: SMEM [4] f32 = (w0, w1, w2, b)   (scalar prefetch)
    # x_ref:      VMEM [3, S, 128] f32  (feature-major, sublane/lane dense)
    # o_ref:      VMEM [S, 128] f32     (full-vreg, unmasked store)
    w0 = params_ref[0]
    w1 = params_ref[1]
    w2 = params_ref[2]
    b = params_ref[3]

    # Pure VPU FMA (no MXU); sigmoid goes to the EUP.
    z = w0 * x_ref[0] + w1 * x_ref[1] + w2 * x_ref[2] + b
    o_ref[...] = jax.nn.sigmoid(z).astype(o_ref.dtype)


def linear_sigmoid(x, weight, bias, *, max_block_rows=2048):
    """x: [N, 3]; weight: [1, 3] (PyTorch nn.Linear layout); bias: [1].

    Computes sigmoid(x @ weight.T + bias) and returns [N, 1] f32.
    """
    n, f = x.shape
    assert f == 3, "Model is nn.Linear(3, 1)"
    x = x.astype(jnp.float32)

    # Feature-major layout [3, N] so rows land on the lane axis.
    # TODO(synk): ideally keep/store X as [3, N] upstream (or fuse this
    # transpose into the producer) to avoid the extra HBM round trip.
    xt = x.T

    # Pad only up to the next 128-lane boundary (partial final grid block
    # handles the rest -- no full-tile pad copy).
    n128 = ((n + 127) // 128) * 128
    if n128 != n:
        xt = jnp.pad(xt, ((0, 0), (0, n128 - n)))
    nb = n128 // 128
    x3 = xt.reshape(3, nb, 128)

    # Second-minor block extent: multiple of 8 (or the full extent for tiny
    # inputs) so every vreg is fully populated; sized for a few MiB per
    # double-buffered step and >= 2 grid steps when possible (v7x megacore).
    if nb <= 8:
        block_rows = nb
    else:
        block_rows = min(max_block_rows, (((nb + 1) // 2) + 7) // 8 * 8)
    grid = (pl.cdiv(nb, block_rows),)

    # (w0, w1, w2, b) as a small SMEM-prefetched scalar vector.
    params = jnp.concatenate(
        [weight.reshape(-1).astype(jnp.float32),
         bias.reshape(-1).astype(jnp.float32)]
    )  # [4]

    out = pl.pallas_call(
        _linear_sigmoid_kernel,
        out_shape=jax.ShapeDtypeStruct((nb, 128), jnp.float32),
        grid_spec=pltpu.PrefetchScalarGridSpec(
            num_scalar_prefetch=1,
            grid=grid,
            in_specs=[
                pl.BlockSpec((3, block_rows, 128),
                             lambda i, params: (0, i, 0)),
            ],
            out_specs=pl.BlockSpec((block_rows, 128),
                                   lambda i, params: (i, 0)),
        ),
        compiler_params=pltpu.CompilerParams(
            dimension_semantics=("parallel",),
        ),
        cost_estimate=pl.CostEstimate(
            flops=7 * n, transcendentals=n, bytes_accessed=16 * n),
    )(params, x3)

    # Flattening [nb, 128] preserves element order; drop padded columns.
    return out.reshape(-1)[:n].reshape(n, 1)


if __name__ == "__main__":
    key = jax.random.PRNGKey(0)
    kx, kw, kb = jax.random.split(key, 3)

    # Synthetic inputs standing in for the CSV features [Feature1..3].
    # TODO(synk): the original script reads ./two.csv; data is built in-script here.
    N, F = 8, 3
    x = jax.random.normal(kx, (N, F), dtype=jnp.float32)

    # Deterministic parameter init mimicking nn.Linear(3, 1):
    # uniform(-1/sqrt(in_features), 1/sqrt(in_features))
    bound = 1.0 / jnp.sqrt(jnp.float32(F))
    weight = jax.random.uniform(kw, (1, F), minval=-bound, maxval=bound,
                                dtype=jnp.float32)
    bias = jax.random.uniform(kb, (1,), minval=-bound, maxval=bound,
                              dtype=jnp.float32)

    out = jax.block_until_ready(linear_sigmoid(x, weight, bias))
    ref = jax.nn.sigmoid(x @ weight.T + bias)
    assert out.shape == (N, 1)
    assert jnp.allclose(out, ref, atol=1e-6, rtol=1e-6)

    # Extra check: multi-step grid + partial final block path.
    N2 = 2200
    x2 = jax.random.normal(kx, (N2, F), dtype=jnp.float32)
    out2 = jax.block_until_ready(linear_sigmoid(x2, weight, bias))
    ref2 = jax.nn.sigmoid(x2 @ weight.T + bias)
    assert out2.shape == (N2, 1)
    assert jnp.allclose(out2, ref2, atol=1e-6, rtol=1e-6)

    print("KERNEL_OK")
</pallas_src>

<mosaic_0001>
module attributes {stable_mosaic.version = 11 : i64} {
  func.func @_linear_sigmoid_kernel(%arg0: i32, %arg1: memref<4xf32, #tpu.memory_space<smem>>, %arg2: memref<3x1x128xf32, #tpu.memory_space<vmem>>, %arg3: memref<1x128xf32, #tpu.memory_space<vmem>>) attributes {dimension_semantics = [#tpu.dimension_semantics<parallel>], iteration_bounds = array<i64: 1>, scalar_prefetch = 1 : i64, scratch_operands = 0 : i64, tpu.core_type = #tpu.core_type<tc>, window_params = [{transform_indices = @transform_0, window_bounds = array<i64: 3, 1, 128>}, {transform_indices = @transform_1, window_bounds = array<i64: 1, 128>}]} {
    %c0 = arith.constant 0 : index
    %0 = memref.load %arg1[%c0] : memref<4xf32, #tpu.memory_space<smem>>
    %c1 = arith.constant 1 : index
    %1 = memref.load %arg1[%c1] : memref<4xf32, #tpu.memory_space<smem>>
    %c2 = arith.constant 2 : index
    %2 = memref.load %arg1[%c2] : memref<4xf32, #tpu.memory_space<smem>>
    %c3 = arith.constant 3 : index
    %3 = memref.load %arg1[%c3] : memref<4xf32, #tpu.memory_space<smem>>
    %c0_0 = arith.constant 0 : index
    %c0_1 = arith.constant 0 : index
    %c0_2 = arith.constant 0 : index
    %4 = vector.load %arg2[%c0_0, %c0_1, %c0_2] : memref<3x1x128xf32, #tpu.memory_space<vmem>>, vector<1x1x128xf32>
    %5 = vector.shape_cast %4 : vector<1x1x128xf32> to vector<1x128xf32>
    %6 = vector.broadcast %0 : f32 to vector<1x128xf32>
    %7 = arith.mulf %6, %5 : vector<1x128xf32>
    %c1_3 = arith.constant 1 : index
    %c0_4 = arith.constant 0 : index
    %c0_5 = arith.constant 0 : index
    %8 = vector.load %arg2[%c1_3, %c0_4, %c0_5] : memref<3x1x128xf32, #tpu.memory_space<vmem>>, vector<1x1x128xf32>
    %9 = vector.shape_cast %8 : vector<1x1x128xf32> to vector<1x128xf32>
    %10 = vector.broadcast %1 : f32 to vector<1x128xf32>
    %11 = arith.mulf %10, %9 : vector<1x128xf32>
    %12 = arith.addf %7, %11 : vector<1x128xf32>
    %c2_6 = arith.constant 2 : index
    %c0_7 = arith.constant 0 : index
    %c0_8 = arith.constant 0 : index
    %13 = vector.load %arg2[%c2_6, %c0_7, %c0_8] : memref<3x1x128xf32, #tpu.memory_space<vmem>>, vector<1x1x128xf32>
    %14 = vector.shape_cast %13 : vector<1x1x128xf32> to vector<1x128xf32>
    %15 = vector.broadcast %2 : f32 to vector<1x128xf32>
    %16 = arith.mulf %15, %14 : vector<1x128xf32>
    %17 = arith.addf %12, %16 : vector<1x128xf32>
    %18 = vector.broadcast %3 : f32 to vector<1x128xf32>
    %19 = arith.addf %17, %18 : vector<1x128xf32>
    %20 = arith.negf %19 : vector<1x128xf32>
    %21 = math.exp %20 : vector<1x128xf32>
    %cst = arith.constant 1.000000e+00 : f32
    %22 = vector.broadcast %cst : f32 to vector<1x128xf32>
    %23 = arith.addf %22, %21 : vector<1x128xf32>
    %24 = arith.divf %22, %23 : vector<1x128xf32>
    %c0_9 = arith.constant 0 : index
    %c0_10 = arith.constant 0 : index
    %25 = vector.load %arg3[%c0_9, %c0_10] : memref<1x128xf32, #tpu.memory_space<vmem>>, vector<1x128xf32>
    tpu.vector_store %arg3[%c0_9, %c0_10], %24 {strides = array<i32>} : memref<1x128xf32, #tpu.memory_space<vmem>>, vector<1x128xf32>,
    return
  }
  func.func @transform_0(%arg0: i32, %arg1: memref<4xf32, #tpu.memory_space<smem>>) -> (i32, i32, i32) {
    %c0_i32 = arith.constant 0 : i32
    %c0_i32_0 = arith.constant 0 : i32
    %c0_i32_1 = arith.constant 0 : i32
    return %c0_i32, %arg0, %c0_i32_0 : i32, i32, i32
  }
  func.func @transform_1(%arg0: i32, %arg1: memref<4xf32, #tpu.memory_space<smem>>) -> (i32, i32) {
    %c0_i32 = arith.constant 0 : i32
    %c0_i32_0 = arith.constant 0 : i32
    return %arg0, %c0_i32 : i32, i32
  }
}

</mosaic_0001>

<llo_original>
// kernel: tpu_custom_call.1
$region0: #{tpu_custom_call.1}
  #allocation0 [shape = 'u32[]', space=smem, size = 0x4, offset = 0x4, fixed_abs, tag = 'smem constant byte address 0x4 - core index']
  #allocation1 [shape = 'u32[144,128]{1,0:T(1,128)}', space=vmem, size = 0x12000, scoped, tag = 'internal scratch']
  #allocation2 [shape = 's32[1]{0}', space=sflag, size = 0x4, scoped, tag = 'scoped memory for tpu_custom_call.1']
  #allocation3 [shape = 'u8[512]{0}', space=smem, size = 0x200, scoped, tag = 'prefetched SMEM operand 0']
  %s0 = inlined_call_operand.hbm [shape: f32[4], index: 0, kind: input, shape index: {}]
  %s1 = inlined_call_operand.vmem [shape: f32[3,1,128], index: 1, kind: input, shape index: {}]
  %s2 = inlined_call_operand.hbm [shape: f32[1,128], index: 2, kind: output, shape index: {}]
  %s3 = sld [smem:[#allocation0]]
  $region14: #{tpu_custom_call.1} parent=0
    _
  %s5 = ssub.s32 1, %s3
  %s6 = scalar_select 0, %s5, %s3
  %8 = dma.hbm_to_smem %s0, 16, [#allocation3], [#allocation2]
  %9 = dma.done [#allocation2], 16
  %10 = sfence
  $region1: #{tpu_custom_call.1} parent=0
    #allocation4 [shape = 'u8[512]{0}', space=vmem, size = 0x400, scoped, tag = 'output window, operand 0, single buffered']
    #allocation5 [shape = 's32[1]{0}', space=sflag, size = 0x4, scoped, tag = 'scoped memory for tpu_custom_call.1']
    %11 = vsyncpa [#allocation5], 0
    // Predicated region
    $region2: #{tpu_custom_call.1} parent=1 // pred_check
      _
    $region3: #{tpu_custom_call.1} parent=1 // pred_check_branch
      %13 = sbr.rel (0) target = $region5
    $region4: #{tpu_custom_call.1} parent=1 // pred_region
      _
    $region5: #{tpu_custom_call.1} parent=1 // pred_fallthru
      _
    %s14 = sld [smem:[#allocation3]]
    %s15 = sld [smem:[#allocation3 + $0x1]]
    %s16 = sld [smem:[#allocation3 + $0x2]]
    %s17 = sld [smem:[#allocation3 + $0x3]]
    %v18 = vld [vmem:[%s1] sm:$0x1]
    %v19 = vstv %s14
    %v20 = vmul.f32 %v19, %v18
    %s21 = scalar_lea.vmem %s1, 1
    %v22 = vld [vmem:[%s21] sm:$0x1]
    %v23 = vstv %s15
    %v24 = vmul.f32 %v23, %v22
    %v25 = vadd.f32 %v20, %v24
    %s26 = scalar_lea.vmem %s1, 2
    %v27 = vld [vmem:[%s26] sm:$0x1]
    %v28 = vstv %s16
    %v29 = vmul.f32 %v28, %v27
    %v30 = vadd.f32 %v25, %v29
    %v31 = vstv %s17
    %v32 = vadd.f32 %v30, %v31
    %v33 = vxor.u32 %v32, 2147483648
    %v34 = vmul.f32 %v33, 1.442695
    %v35 = vpow.pop %v34
    %v36 = vadd.f32 %v35, 1.0
    %v37 = vrcp.pop %v36
    %v38 = vmul.f32 1.0, %v37
    %39 = vst [vmem:[#allocation4] sm:$0x1] %v38
    // Predicated region
    $region6: #{tpu_custom_call.1} parent=1 // pred_check
      _
    $region7: #{tpu_custom_call.1} parent=1 // pred_check_branch
      %41 = sbr.rel (0) target = $region9
    $region8: #{tpu_custom_call.1} parent=1 // pred_region
      %s43 = ssub.s32 16, 16
      %44 = vsyncadd [#allocation5], %s43
      %s46 = sshll.u32 [#allocation4], 4
      %s47 = int_to_ptr.vmem [resolvable:$true] %s46
      %49 = dma.vmem_to_hbm [thread:$0]  %s47, 16, %s2, [#allocation5]
    $region9: #{tpu_custom_call.1} parent=1 // pred_fallthru
      _
    // Predicated region
    $region10: #{tpu_custom_call.1} parent=1 // pred_check
      _
    $region11: #{tpu_custom_call.1} parent=1 // pred_check_branch
      %51 = sbr.rel (0) target = $region13
    $region12: #{tpu_custom_call.1} parent=1 // pred_region
      %52 = dma.done [#allocation5], 16
    $region13: #{tpu_custom_call.1} parent=1 // pred_fallthru
      _
    %53 = vsyncpa [#allocation5], 1

</llo_original>
